<compile_context>
chip_gen: v7x
topology: tpu7x:2x2x1
jax: 0.10.0
libtpu: 0.0.40
codegen_flags: <defaults>
</compile_context>

<pallas_src>
import functools
import math

import jax
import jax.numpy as jnp
from jax.experimental import pallas as pl
from jax.experimental.pallas import tpu as pltpu


def _round_up(x, m):
    return ((x + m - 1) // m) * m


def _decoder_kernel(z_ref, w1_ref, b1_ref, wh_ref, bh_ref, out_ref, *, seg):
    # --- fc1 + softplus -> hidden (one batch tile; weights resident in VMEM) ---
    z = z_ref[...].astype(w1_ref.dtype)
    h_lin = jnp.dot(z, w1_ref[...], preferred_element_type=jnp.float32) + b1_ref[...]
    hidden = jax.nn.softplus(h_lin)

    # --- fused heads: single MXU matmul for fc21 | fc22 | fc23 ---------------
    y = jnp.dot(hidden.astype(wh_ref.dtype), wh_ref[...],
                preferred_element_type=jnp.float32) + bh_ref[...]

    # Segment boundaries are multiples of 128 -> lane-aligned slices (cheap).
    loc = y[:, 0 * seg:1 * seg]
    scale = jax.nn.softplus(y[:, 1 * seg:2 * seg])
    drop = jax.nn.sigmoid(jnp.clip(y[:, 2 * seg:3 * seg], -3.0, 3.0))

    # Lane-dense packed output slab [TB, 3*seg]: unmasked full-lane stores.
    out_ref[:, 0 * seg:1 * seg] = loc.astype(out_ref.dtype)
    out_ref[:, 1 * seg:2 * seg] = scale.astype(out_ref.dtype)
    out_ref[:, 2 * seg:3 * seg] = drop.astype(out_ref.dtype)


def pack_decoder_params(p, *, dtype=jnp.float32):
    """Pack fc21/fc22/fc23 into one lane-aligned [hidden, 3*seg] slab.

    Returns (packed_params, in_dim, seg). Padding columns are zero so the
    padded outputs are harmless and simply sliced away in the wrapper.
    Pass dtype=jnp.bfloat16 to halve weight HBM/VMEM traffic (accumulation
    stays f32 in-kernel).
    """
    in_dim = p["w21"].shape[1]
    hidden = p["w1"].shape[1]
    seg = _round_up(in_dim, 128)

    wh = jnp.zeros((hidden, 3 * seg), dtype)
    bh = jnp.zeros((1, 3 * seg), dtype)
    for k, (wn, bn) in enumerate((("w21", "b21"), ("w22", "b22"), ("w23", "b23"))):
        wh = wh.at[:, k * seg:k * seg + in_dim].set(p[wn].astype(dtype))
        bh = bh.at[:, k * seg:k * seg + in_dim].set(p[bn].astype(dtype))

    packed = dict(
        w1=p["w1"].astype(dtype),
        b1=p["b1"].astype(dtype),
        w_heads=wh,
        b_heads=bh,
    )
    return packed, in_dim, seg


def decoder_forward(z, packed, in_dim, seg, *, batch_tile=512):
    """z: [B, z_dim]. Returns (loc, scale, dropout), each [B, in_dim] f32."""
    B, z_dim = z.shape
    hidden = packed["w1"].shape[1]
    n_out = 3 * seg

    # Batch tile: whole batch if it is small, otherwise a multiple of 8
    # (sublane alignment). Partial trailing blocks are handled by Pallas.
    if B <= batch_tile:
        tb = B
    else:
        tb = max(8, (min(batch_tile, B) // 8) * 8)
    grid = (pl.cdiv(B, tb),)

    # NOTE: for very large in_dim (weights 3*seg*hidden*dtype exceeding the
    # VMEM budget, esp. v7x 64 MiB) add a second "arbitrary" grid axis tiling
    # the head-weight columns and keep `hidden` in a VMEM scratch computed
    # under pl.when(j == 0).

    kernel = functools.partial(_decoder_kernel, seg=seg)
    packed_out = pl.pallas_call(
        kernel,
        out_shape=jax.ShapeDtypeStruct((B, n_out), jnp.float32),
        grid=grid,
        in_specs=[
            pl.BlockSpec((tb, z_dim), lambda i: (i, 0)),      # z: streamed per tile
            pl.BlockSpec((z_dim, hidden), lambda i: (0, 0)),  # fc1 weight: resident
            pl.BlockSpec((1, hidden), lambda i: (0, 0)),      # fc1 bias:   resident
            pl.BlockSpec((hidden, n_out), lambda i: (0, 0)),  # fused heads: resident
            pl.BlockSpec((1, n_out), lambda i: (0, 0)),       # fused bias:  resident
        ],
        out_specs=pl.BlockSpec((tb, n_out), lambda i: (i, 0)),  # lane-dense slab
        compiler_params=pltpu.CompilerParams(
            dimension_semantics=("parallel",),      # shard batch tiles across TCs (v7x)
            vmem_limit_bytes=64 * 1024 * 1024,      # lift scoped default, fits v7x physical
        ),
    )(z, packed["w1"], packed["b1"], packed["w_heads"], packed["b_heads"])

    loc = packed_out[:, 0 * seg:0 * seg + in_dim]
    scale = packed_out[:, 1 * seg:1 * seg + in_dim]
    dropout = packed_out[:, 2 * seg:2 * seg + in_dim]
    return loc, scale, dropout


def init_decoder_params(key, in_dim, z_dim, hidden_dim):
    """nn.Linear-style init. Weights stored transposed: [in_features, out_features]."""
    ks = jax.random.split(key, 8)

    def linear(kw, kb, fan_in, fan_out):
        bound = 1.0 / math.sqrt(fan_in)
        w = jax.random.uniform(kw, (fan_in, fan_out), jnp.float32, -bound, bound)
        b = jax.random.uniform(kb, (1, fan_out), jnp.float32, -bound, bound)
        return w, b

    w1, b1 = linear(ks[0], ks[1], z_dim, hidden_dim)
    w21, b21 = linear(ks[2], ks[3], hidden_dim, in_dim)
    w22, b22 = linear(ks[4], ks[5], hidden_dim, in_dim)
    w23, b23 = linear(ks[6], ks[7], hidden_dim, in_dim)
    return dict(w1=w1, b1=b1, w21=w21, b21=b21,
                w22=w22, b22=b22, w23=w23, b23=b23)


def decoder_reference(z, p):
    """Pure-JAX reference for correctness check."""
    hidden = jax.nn.softplus(z @ p["w1"] + p["b1"])
    loc = hidden @ p["w21"] + p["b21"]
    scale = jax.nn.softplus(hidden @ p["w22"] + p["b22"])
    dropout = jax.nn.sigmoid(jnp.clip(hidden @ p["w23"] + p["b23"], -3.0, 3.0))
    return loc, scale, dropout


if __name__ == "__main__":
    in_dim, z_dim, hidden_dim = 16, 8, 32
    batch = 8

    key = jax.random.PRNGKey(0)
    k_param, k_z = jax.random.split(key)

    params = init_decoder_params(k_param, in_dim, z_dim, hidden_dim)
    z = jax.random.normal(k_z, (batch, z_dim), jnp.float32)

    packed, in_dim_p, seg = pack_decoder_params(params, dtype=jnp.float32)
    loc, scale, dropout = decoder_forward(z, packed, in_dim_p, seg)
    jax.block_until_ready((loc, scale, dropout))

    # sanity check against pure-JAX reference
    loc_r, scale_r, dropout_r = decoder_reference(z, params)
    assert jnp.allclose(loc, loc_r, atol=1e-5), "loc mismatch"
    assert jnp.allclose(scale, scale_r, atol=1e-5), "scale mismatch"
    assert jnp.allclose(dropout, dropout_r, atol=1e-5), "dropout mismatch"

    print("KERNEL_OK")
</pallas_src>

<mosaic_0001>
module attributes {stable_mosaic.version = 11 : i64} {
  func.func @_decoder_kernel(%arg0: i32, %arg1: memref<8x8xf32, #tpu.memory_space<vmem>>, %arg2: memref<8x32xf32, #tpu.memory_space<vmem>>, %arg3: memref<1x32xf32, #tpu.memory_space<vmem>>, %arg4: memref<32x384xf32, #tpu.memory_space<vmem>>, %arg5: memref<1x384xf32, #tpu.memory_space<vmem>>, %arg6: memref<8x384xf32, #tpu.memory_space<vmem>>) attributes {dimension_semantics = [#tpu.dimension_semantics<parallel>], iteration_bounds = array<i64: 1>, scalar_prefetch = 0 : i64, scratch_operands = 0 : i64, tpu.core_type = #tpu.core_type<tc>, window_params = [{transform_indices = @transform_0, window_bounds = array<i64: 8, 8>}, {pipeline_mode = #tpu.pipeline_mode<synchronous>, transform_indices = @transform_1, window_bounds = array<i64: 8, 32>}, {pipeline_mode = #tpu.pipeline_mode<synchronous>, transform_indices = @transform_2, window_bounds = array<i64: 1, 32>}, {pipeline_mode = #tpu.pipeline_mode<synchronous>, transform_indices = @transform_3, window_bounds = array<i64: 32, 384>}, {pipeline_mode = #tpu.pipeline_mode<synchronous>, transform_indices = @transform_4, window_bounds = array<i64: 1, 384>}, {transform_indices = @transform_5, window_bounds = array<i64: 8, 384>}]} {
    %c0 = arith.constant 0 : index
    %c0_0 = arith.constant 0 : index
    %0 = vector.load %arg1[%c0, %c0_0] : memref<8x8xf32, #tpu.memory_space<vmem>>, vector<8x8xf32>
    %c0_1 = arith.constant 0 : index
    %c0_2 = arith.constant 0 : index
    %1 = vector.load %arg2[%c0_1, %c0_2] : memref<8x32xf32, #tpu.memory_space<vmem>>, vector<8x32xf32>
    %cst = arith.constant dense<0.000000e+00> : vector<8x32xf32>
    %2 = tpu.matmul %0, %1, %cst {dimension_numbers = #tpu.dot_dimension_numbers<[1], [0], [0], [1], [0, 0, 1, 1], [], []>} : vector<8x8xf32>, vector<8x32xf32>, vector<8x32xf32> -> vector<8x32xf32>
    %c0_3 = arith.constant 0 : index
    %c0_4 = arith.constant 0 : index
    %3 = vector.load %arg3[%c0_3, %c0_4] : memref<1x32xf32, #tpu.memory_space<vmem>>, vector<1x32xf32>
    %4 = vector.broadcast %3 : vector<1x32xf32> to vector<8x32xf32>
    %5 = arith.addf %2, %4 : vector<8x32xf32>
    %cst_5 = arith.constant 0.000000e+00 : f32
    %6 = vector.broadcast %cst_5 : f32 to vector<8x32xf32>
    %7 = arith.maximumf %5, %6 : vector<8x32xf32>
    %8 = vector.broadcast %cst_5 : f32 to vector<8x32xf32>
    %9 = arith.subf %5, %8 : vector<8x32xf32>
    %10 = arith.cmpf one, %9, %9 : vector<8x32xf32>
    %11 = vector.broadcast %cst_5 : f32 to vector<8x32xf32>
    %12 = arith.addf %5, %11 : vector<8x32xf32>
    %13 = math.absf %9 : vector<8x32xf32>
    %cst_6 = arith.constant 0.000000e+00 : f32
    %14 = vector.broadcast %cst_6 : f32 to vector<8x32xf32>
    %15 = arith.subf %14, %13 : vector<8x32xf32>
    %16 = math.exp %15 : vector<8x32xf32>
    %17 = math.log1p %16 : vector<8x32xf32>
    %18 = arith.addf %7, %17 : vector<8x32xf32>
    %19 = arith.select %10, %12, %18 : vector<8x32xi1>, vector<8x32xf32>
    %c0_7 = arith.constant 0 : index
    %c0_8 = arith.constant 0 : index
    %20 = vector.load %arg4[%c0_7, %c0_8] : memref<32x384xf32, #tpu.memory_space<vmem>>, vector<32x384xf32>
    %cst_9 = arith.constant dense<0.000000e+00> : vector<8x384xf32>
    %21 = tpu.matmul %19, %20, %cst_9 {dimension_numbers = #tpu.dot_dimension_numbers<[1], [0], [0], [1], [0, 0, 1, 1], [], []>} : vector<8x32xf32>, vector<32x384xf32>, vector<8x384xf32> -> vector<8x384xf32>
    %c0_10 = arith.constant 0 : index
    %c0_11 = arith.constant 0 : index
    %22 = vector.load %arg5[%c0_10, %c0_11] : memref<1x384xf32, #tpu.memory_space<vmem>>, vector<1x384xf32>
    %23 = vector.broadcast %22 : vector<1x384xf32> to vector<8x384xf32>
    %24 = arith.addf %21, %23 : vector<8x384xf32>
    %25 = vector.extract_strided_slice %24 {offsets = [0, 0], sizes = [8, 128], strides = [1, 1]} : vector<8x384xf32> to vector<8x128xf32>
    %26 = vector.extract_strided_slice %24 {offsets = [0, 128], sizes = [8, 128], strides = [1, 1]} : vector<8x384xf32> to vector<8x128xf32>
    %cst_12 = arith.constant 0.000000e+00 : f32
    %27 = vector.broadcast %cst_12 : f32 to vector<8x128xf32>
    %28 = arith.maximumf %26, %27 : vector<8x128xf32>
    %29 = vector.broadcast %cst_12 : f32 to vector<8x128xf32>
    %30 = arith.subf %26, %29 : vector<8x128xf32>
    %31 = arith.cmpf one, %30, %30 : vector<8x128xf32>
    %32 = vector.broadcast %cst_12 : f32 to vector<8x128xf32>
    %33 = arith.addf %26, %32 : vector<8x128xf32>
    %34 = math.absf %30 : vector<8x128xf32>
    %cst_13 = arith.constant 0.000000e+00 : f32
    %35 = vector.broadcast %cst_13 : f32 to vector<8x128xf32>
    %36 = arith.subf %35, %34 : vector<8x128xf32>
    %37 = math.exp %36 : vector<8x128xf32>
    %38 = math.log1p %37 : vector<8x128xf32>
    %39 = arith.addf %28, %38 : vector<8x128xf32>
    %40 = arith.select %31, %33, %39 : vector<8x128xi1>, vector<8x128xf32>
    %41 = vector.extract_strided_slice %24 {offsets = [0, 256], sizes = [8, 128], strides = [1, 1]} : vector<8x384xf32> to vector<8x128xf32>
    %cst_14 = arith.constant -3.000000e+00 : f32
    %cst_15 = arith.constant 3.000000e+00 : f32
    %42 = vector.broadcast %cst_14 : f32 to vector<8x128xf32>
    %43 = arith.maximumf %42, %41 : vector<8x128xf32>
    %44 = vector.broadcast %cst_15 : f32 to vector<8x128xf32>
    %45 = arith.minimumf %44, %43 : vector<8x128xf32>
    %46 = arith.negf %45 : vector<8x128xf32>
    %47 = math.exp %46 : vector<8x128xf32>
    %cst_16 = arith.constant 1.000000e+00 : f32
    %48 = vector.broadcast %cst_16 : f32 to vector<8x128xf32>
    %49 = arith.addf %48, %47 : vector<8x128xf32>
    %50 = arith.divf %48, %49 : vector<8x128xf32>
    %c0_17 = arith.constant 0 : index
    %c0_18 = arith.constant 0 : index
    %51 = vector.load %arg6[%c0_17, %c0_18] : memref<8x384xf32, #tpu.memory_space<vmem>>, vector<8x128xf32>
    tpu.vector_store %arg6[%c0_17, %c0_18], %25 {strides = array<i32>} : memref<8x384xf32, #tpu.memory_space<vmem>>, vector<8x128xf32>,
    %c0_19 = arith.constant 0 : index
    %c128 = arith.constant 128 : index
    %52 = vector.load %arg6[%c0_19, %c128] : memref<8x384xf32, #tpu.memory_space<vmem>>, vector<8x128xf32>
    tpu.vector_store %arg6[%c0_19, %c128], %40 {strides = array<i32>} : memref<8x384xf32, #tpu.memory_space<vmem>>, vector<8x128xf32>,
    %c0_20 = arith.constant 0 : index
    %c256 = arith.constant 256 : index
    %53 = vector.load %arg6[%c0_20, %c256] : memref<8x384xf32, #tpu.memory_space<vmem>>, vector<8x128xf32>
    tpu.vector_store %arg6[%c0_20, %c256], %50 {strides = array<i32>} : memref<8x384xf32, #tpu.memory_space<vmem>>, vector<8x128xf32>,
    return
  }
  func.func @transform_0(%arg0: i32) -> (i32, i32) {
    %c0_i32 = arith.constant 0 : i32
    %c0_i32_0 = arith.constant 0 : i32
    return %arg0, %c0_i32 : i32, i32
  }
  func.func @transform_1(%arg0: i32) -> (i32, i32) {
    %c0_i32 = arith.constant 0 : i32
    %c0_i32_0 = arith.constant 0 : i32
    %c0_i32_1 = arith.constant 0 : i32
    return %c0_i32, %c0_i32_0 : i32, i32
  }
  func.func @transform_2(%arg0: i32) -> (i32, i32) {
    %c0_i32 = arith.constant 0 : i32
    %c0_i32_0 = arith.constant 0 : i32
    %c0_i32_1 = arith.constant 0 : i32
    return %c0_i32, %c0_i32_0 : i32, i32
  }
  func.func @transform_3(%arg0: i32) -> (i32, i32) {
    %c0_i32 = arith.constant 0 : i32
    %c0_i32_0 = arith.constant 0 : i32
    %c0_i32_1 = arith.constant 0 : i32
    return %c0_i32, %c0_i32_0 : i32, i32
  }
  func.func @transform_4(%arg0: i32) -> (i32, i32) {
    %c0_i32 = arith.constant 0 : i32
    %c0_i32_0 = arith.constant 0 : i32
    %c0_i32_1 = arith.constant 0 : i32
    return %c0_i32, %c0_i32_0 : i32, i32
  }
  func.func @transform_5(%arg0: i32) -> (i32, i32) {
    %c0_i32 = arith.constant 0 : i32
    %c0_i32_0 = arith.constant 0 : i32
    return %arg0, %c0_i32 : i32, i32
  }
}

</mosaic_0001>

<llo_original>
// kernel: tpu_custom_call.1
$region0: #{tpu_custom_call.1}
  #allocation0 [shape = 'u32[]', space=smem, size = 0x4, offset = 0x4, fixed_abs, tag = 'smem constant byte address 0x4 - core index']
  #allocation1 [shape = 'u32[144,128]{1,0:T(1,128)}', space=vmem, size = 0x12000, scoped, tag = 'internal scratch']
  %s0 = inlined_call_operand.hbm [shape: f32[8,8], index: 0, kind: input, shape index: {}]
  %s1 = inlined_call_operand.hbm [shape: f32[8,32], index: 1, kind: input, shape index: {}]
  %s2 = inlined_call_operand.hbm [shape: f32[1,32], index: 2, kind: input, shape index: {}]
  %s3 = inlined_call_operand.hbm [shape: f32[32,384], index: 3, kind: input, shape index: {}]
  %s4 = inlined_call_operand.hbm [shape: f32[1,384], index: 4, kind: input, shape index: {}]
  %s5 = inlined_call_operand.hbm [shape: f32[8,384], index: 5, kind: output, shape index: {}]
  %s6 = sld [smem:[#allocation0]]
  $region50: #{tpu_custom_call.1} parent=0
    _
  %s8 = ssub.s32 1, %s6
  %s9 = scalar_select 0, %s8, %s6
  $region1: #{tpu_custom_call.1} parent=0
    #allocation2 [shape = 'u8[4096]{0}', space=vmem, size = 0x1000, scoped, tag = 'input window, operand 0, single buffered']
    #allocation3 [shape = 's32[1]{0}', space=sflag, size = 0x4, scoped, tag = 'scoped memory for tpu_custom_call.1']
    #allocation4 [shape = 's32[1]{0}', space=sflag, size = 0x4, scoped, tag = 'scoped memory for tpu_custom_call.1']
    #allocation5 [shape = 'u8[4096]{0}', space=vmem, size = 0x1000, scoped, tag = 'input window, operand 1, single buffered']
    #allocation6 [shape = 's32[1]{0}', space=sflag, size = 0x4, scoped, tag = 'scoped memory for tpu_custom_call.1']
    #allocation7 [shape = 'u8[512]{0}', space=vmem, size = 0x400, scoped, tag = 'input window, operand 2, single buffered']
    #allocation8 [shape = 'u8[49152]{0}', space=vmem, size = 0xc000, scoped, tag = 'input window, operand 3, single buffered']
    #allocation9 [shape = 's32[1]{0}', space=sflag, size = 0x4, scoped, tag = 'scoped memory for tpu_custom_call.1']
    #allocation10 [shape = 'u8[1536]{0}', space=vmem, size = 0x800, scoped, tag = 'input window, operand 4, single buffered']
    #allocation11 [shape = 'u8[12288]{0}', space=vmem, size = 0x3000, scoped, tag = 'output window, operand 0, single buffered']
    %10 = vsyncpa [#allocation3], 0
    %11 = vsyncpa [#allocation6], 0
    %12 = vsyncpa [#allocation9], 0
    %13 = vsyncpa [#allocation4], 0
    // Predicated region
    $region2: #{tpu_custom_call.1} parent=1 // pred_check
      _
    $region3: #{tpu_custom_call.1} parent=1 // pred_check_branch
      %15 = sbr.rel (0) target = $region5
    $region4: #{tpu_custom_call.1} parent=1 // pred_region
      %s17 = ssub.s32 128, 128
      %18 = vsyncadd [#allocation3], %s17
      %s20 = sshll.u32 [#allocation2], 4
      %s21 = int_to_ptr.vmem [resolvable:$true] %s20
      %23 = dma.hbm_to_vmem [thread:$0]  %s0, 128, %s21, [#allocation3]
    $region5: #{tpu_custom_call.1} parent=1 // pred_fallthru
      _
    // Predicated region
    $region6: #{tpu_custom_call.1} parent=1 // pred_check
      _
    $region7: #{tpu_custom_call.1} parent=1 // pred_check_branch
      %25 = sbr.rel (0) target = $region9
    $region8: #{tpu_custom_call.1} parent=1 // pred_region
      %s27 = ssub.s32 128, 128
      %28 = vsyncadd [#allocation6], %s27
      %s30 = sshll.u32 [#allocation5], 4
      %s31 = int_to_ptr.vmem [resolvable:$true] %s30
      %33 = dma.hbm_to_vmem [thread:$0]  %s1, 128, %s31, [#allocation6]
    $region9: #{tpu_custom_call.1} parent=1 // pred_fallthru
      _
    // Predicated region
    $region10: #{tpu_custom_call.1} parent=1 // pred_check
      _
    $region11: #{tpu_custom_call.1} parent=1 // pred_check_branch
      %35 = sbr.rel (0) target = $region13
    $region12: #{tpu_custom_call.1} parent=1 // pred_region
      %s37 = ssub.s32 16, 16
      %38 = vsyncadd [#allocation6], %s37
      %s40 = sshll.u32 [#allocation7], 4
      %s41 = int_to_ptr.vmem [resolvable:$true] %s40
      %43 = dma.hbm_to_vmem [thread:$0]  %s2, 16, %s41, [#allocation6]
    $region13: #{tpu_custom_call.1} parent=1 // pred_fallthru
      _
    // Predicated region
    $region14: #{tpu_custom_call.1} parent=1 // pred_check
      _
    $region15: #{tpu_custom_call.1} parent=1 // pred_check_branch
      %45 = sbr.rel (0) target = $region17
    $region16: #{tpu_custom_call.1} parent=1 // pred_region
      %s47 = ssub.s32 1536, 1536
      %48 = vsyncadd [#allocation9], %s47
      %s49 = sshll.u32 [#allocation8], 4
      %s50 = int_to_ptr.vmem [resolvable:$true] %s49
      %55 = dma.hbm_to_vmem [thread:$0]  %s3, 1536, %s50, [#allocation9], 384, 384, 24
    $region17: #{tpu_custom_call.1} parent=1 // pred_fallthru
      _
    // Predicated region
    $region18: #{tpu_custom_call.1} parent=1 // pred_check
      _
    $region19: #{tpu_custom_call.1} parent=1 // pred_check_branch
      %57 = sbr.rel (0) target = $region21
    $region20: #{tpu_custom_call.1} parent=1 // pred_region
      %s59 = ssub.s32 48, 48
      %60 = vsyncadd [#allocation9], %s59
      %s62 = sshll.u32 [#allocation10], 4
      %s63 = int_to_ptr.vmem [resolvable:$true] %s62
      %65 = dma.hbm_to_vmem [thread:$0]  %s4, 48, %s63, [#allocation9]
    $region21: #{tpu_custom_call.1} parent=1 // pred_fallthru
      _
    // Predicated region
    $region22: #{tpu_custom_call.1} parent=1 // pred_check
      _
    $region23: #{tpu_custom_call.1} parent=1 // pred_check_branch
      %67 = sbr.rel (0) target = $region25
    $region24: #{tpu_custom_call.1} parent=1 // pred_region
      %68 = dma.done [#allocation3], 128
    $region25: #{tpu_custom_call.1} parent=1 // pred_fallthru
      _
    // Predicated region
    $region26: #{tpu_custom_call.1} parent=1 // pred_check
      _
    $region27: #{tpu_custom_call.1} parent=1 // pred_check_branch
      %70 = sbr.rel (0) target = $region29
    $region28: #{tpu_custom_call.1} parent=1 // pred_region
      %71 = dma.done [#allocation6], 128
    $region29: #{tpu_custom_call.1} parent=1 // pred_fallthru
      _
    // Predicated region
    $region30: #{tpu_custom_call.1} parent=1 // pred_check
      _
    $region31: #{tpu_custom_call.1} parent=1 // pred_check_branch
      %73 = sbr.rel (0) target = $region33
    $region32: #{tpu_custom_call.1} parent=1 // pred_region
      %74 = dma.done [#allocation6], 16
    $region33: #{tpu_custom_call.1} parent=1 // pred_fallthru
      _
    // Predicated region
    $region34: #{tpu_custom_call.1} parent=1 // pred_check
      _
    $region35: #{tpu_custom_call.1} parent=1 // pred_check_branch
      %76 = sbr.rel (0) target = $region37
    $region36: #{tpu_custom_call.1} parent=1 // pred_region
      %77 = dma.done [#allocation9], 1536
    $region37: #{tpu_custom_call.1} parent=1 // pred_fallthru
      _
    // Predicated region
    $region38: #{tpu_custom_call.1} parent=1 // pred_check
      _
    $region39: #{tpu_custom_call.1} parent=1 // pred_check_branch
      %79 = sbr.rel (0) target = $region41
    $region40: #{tpu_custom_call.1} parent=1 // pred_region
      %80 = dma.done [#allocation9], 48
    $region41: #{tpu_custom_call.1} parent=1 // pred_fallthru
      _
    %v81 = vld [vmem:[#allocation2] sm:$0xff]
    %v82 = vld [vmem:[#allocation5] sm:$0xff]
    %v83 = vld [vmem:[#allocation7] sm:$0x1]
    %v85 = vlaneseq
    %v86 = vshrl.u32 %v85, 7
    %v87 = vsub.s32 0, %v86
    %v88 = vrot.slane %v83, %v87
    %vm90 = vcmask 64512
    %v92 = vsel %vm90, %v81, 0
    %94 = vmatprep.subr.mxu0 0.0
    %95 = vmatpush1.msra.mxu0 %v82
    %96 = vmatprep.subr.mxu0 0.0
    %97 = vmatpush1.msra.mxu0 0.0
    %98 = vmatprep.subr.mxu0 0.0
    %99 = vmatpush1.msra.mxu0 0.0
    %100 = vmatprep.subr.mxu0 0.0
    %101 = vmatpush1.msra.mxu0 0.0
    %102 = vmatprep.subr.mxu0 0.0
    %103 = vmatpush1.msra.mxu0 0.0
    %104 = vmatprep.subr.mxu0 0.0
    %105 = vmatpush1.msra.mxu0 0.0
    %106 = vmatprep.subr.mxu0 0.0
    %107 = vmatpush1.msra.mxu0 0.0
    %108 = vmatprep.subr.mxu0 0.0
    %109 = vmatpush1.msra.mxu0 0.0
    %110 = vmatprep.subr.mxu0 0.0
    %111 = vmatpush1.msra.mxu0 0.0
    %112 = vmatprep.subr.mxu0 0.0
    %113 = vmatpush1.msra.mxu0 0.0
    %114 = vmatprep.subr.mxu0 0.0
    %115 = vmatpush1.msra.mxu0 0.0
    %116 = vmatprep.subr.mxu0 0.0
    %117 = vmatpush1.msra.mxu0 0.0
    %118 = vmatprep.subr.mxu0 0.0
    %119 = vmatpush1.msra.mxu0 0.0
    %120 = vmatprep.subr.mxu0 0.0
    %121 = vmatpush1.msra.mxu0 0.0
    %122 = vmatprep.subr.mxu0 0.0
    %123 = vmatpush1.msra.mxu0 0.0
    %124 = vmatprep.subr.mxu0 0.0
    %125 = vmatpush1.msra.mxu0 0.0
    %126 = vmatprep.subr.mxu0 0.0
    %127 = vmatpush1.msra.mxu0 0.0
    %128 = vmatprep.subr.mxu0 0.0
    %129 = vmatpush1.msra.mxu0 0.0
    %130 = vmatprep.subr.mxu0 0.0
    %131 = vmatpush1.msra.mxu0 0.0
    %132 = vmatprep.subr.mxu0 0.0
    %133 = vmatpush1.msra.mxu0 0.0
    %134 = vmatprep.subr.mxu0 0.0
    %135 = vmatpush1.msra.mxu0 0.0
    %136 = vmatprep.subr.mxu0 0.0
    %137 = vmatpush1.msra.mxu0 0.0
    %138 = vmatprep.subr.mxu0 0.0
    %139 = vmatpush1.msra.mxu0 0.0
    %140 = vmatprep.subr.mxu0 0.0
    %141 = vmatpush1.msra.mxu0 0.0
    %142 = vmatprep.subr.mxu0 0.0
    %143 = vmatpush1.msra.mxu0 0.0
    %144 = vmatprep.subr.mxu0 0.0
    %145 = vmatpush1.msra.mxu0 0.0
    %146 = vmatprep.subr.mxu0 0.0
    %147 = vmatpush1.msra.mxu0 0.0
    %148 = vmatprep.subr.mxu0 0.0
    %149 = vmatpush1.msra.mxu0 0.0
    %150 = vmatprep.subr.mxu0 0.0
    %151 = vmatpush1.msra.mxu0 0.0
    %152 = vmatprep.subr.mxu0 0.0
    %153 = vmatpush1.msra.mxu0 0.0
    %154 = vmatprep.subr.mxu0 0.0
    %155 = vmatpush1.msra.mxu0 0.0
    %156 = vmatprep.subr.mxu0 0.0
    %157 = vmatpush1.msra.mxu0 0.0
    %158 = vmatprep.mubr.f32.mxu0 0.0
    %159 = vmatmul.mubr.f32.gmra.mrb[0].mxu0 %v92
    %v160 = vpop.f32.mrb[0].mxu0
    %v161 = vadd.f32 %v88, %v160
    %v162 = vpop.f32.mrb[0].mxu0
    %163 = vdwg.mxu0
    %v164 = vmax.f32 %v161, 0.0
    %vm165 = vcmp.ne.f32.partialorder %v161, %v161
    %v166 = vadd.f32 %v161, 0.0
    %v167 = vand.u32 2147483647, %v161
    %v168 = vsub.f32 0.0, %v167
    %v169 = vmul.f32 %v168, 1.442695
    %v170 = vpow.pop %v169
    %v171 = vadd.f32 %v170, 1.0
    %v172 = vlog2.pop %v171
    %v173 = vmul.f32 %v172, 0.6931472
    %v174 = vmul.f32 -0.5, %v170
    %v175 = vadd.f32 %v174, 1.0
    %v176 = vmul.f32 %v175, %v170
    %v177 = vand.u32 2147483647, %v170
    %vm178 = vcmp.lt.f32.partialorder %v177, 0.0004427343
    %v179 = vsel %vm178, %v176, %v173
    %v180 = vadd.f32 %v164, %v179
    %v181 = vsel %vm165, %v166, %v180
    %v182 = vld [vmem:[#allocation8] sm:$0xff]
    %v183 = vld [vmem:[#allocation8 + $0x8] sm:$0xff]
    %v184 = vld [vmem:[#allocation8 + $0x10] sm:$0xff]
    %v185 = vld [vmem:[#allocation8 + $0x18] sm:$0xff]
    %v186 = vld [vmem:[#allocation8 + $0x20] sm:$0xff]
    %v187 = vld [vmem:[#allocation8 + $0x28] sm:$0xff]
    %v188 = vld [vmem:[#allocation8 + $0x30] sm:$0xff]
    %v189 = vld [vmem:[#allocation8 + $0x38] sm:$0xff]
    %v190 = vld [vmem:[#allocation8 + $0x40] sm:$0xff]
    %v191 = vld [vmem:[#allocation8 + $0x48] sm:$0xff]
    %v192 = vld [vmem:[#allocation8 + $0x50] sm:$0xff]
    %v193 = vld [vmem:[#allocation8 + $0x58] sm:$0xff]
    %v194 = vld [vmem:[#allocation10] sm:$0x7]
    %v196 = vlaneseq
    %v197 = vshrl.u32 %v196, 7
    %v198 = vsub.s32 0, %v197
    %v199 = vrot.slane %v194, %v198
    %v200 = vlaneseq
    %v201 = vshrl.u32 %v200, 7
    %v202 = vsub.s32 1, %v201
    %v203 = vrot.slane %v194, %v202
    %v204 = vlaneseq
    %v205 = vshrl.u32 %v204, 7
    %v206 = vsub.s32 2, %v205
    %v207 = vrot.slane %v194, %v206
    %vm211 = vcmask 261120
    %v213 = vsel %vm211, %v181, 0
    %215 = vmatprep.subr.mxu0 %v183
    %216 = vmatpush1.msra.mxu0 %v182
    %217 = vmatprep.subr.mxu0 %v186
    %218 = vmatpush1.msra.mxu0 %v185
    %219 = vmatprep.subr.mxu0 %v189
    %220 = vmatpush1.msra.mxu0 %v188
    %221 = vmatprep.subr.mxu0 %v192
    %222 = vmatpush1.msra.mxu0 %v191
    %223 = vmatprep.subr.mxu0 0.0
    %224 = vmatpush1.msra.mxu0 0.0
    %225 = vmatprep.subr.mxu0 0.0
    %226 = vmatpush1.msra.mxu0 0.0
    %227 = vmatprep.subr.mxu0 0.0
    %228 = vmatpush1.msra.mxu0 0.0
    %229 = vmatprep.subr.mxu0 0.0
    %230 = vmatpush1.msra.mxu0 0.0
    %231 = vmatprep.subr.mxu0 0.0
    %232 = vmatpush1.msra.mxu0 0.0
    %233 = vmatprep.subr.mxu0 0.0
    %234 = vmatpush1.msra.mxu0 0.0
    %235 = vmatprep.subr.mxu0 0.0
    %236 = vmatpush1.msra.mxu0 0.0
    %237 = vmatprep.subr.mxu0 0.0
    %238 = vmatpush1.msra.mxu0 0.0
    %239 = vmatprep.subr.mxu0 0.0
    %240 = vmatpush1.msra.mxu0 0.0
    %241 = vmatprep.subr.mxu0 0.0
    %242 = vmatpush1.msra.mxu0 0.0
    %243 = vmatprep.subr.mxu0 0.0
    %244 = vmatpush1.msra.mxu0 0.0
    %245 = vmatprep.subr.mxu0 0.0
    %246 = vmatpush1.msra.mxu0 0.0
    %247 = vmatprep.subr.mxu0 0.0
    %248 = vmatpush1.msra.mxu0 0.0
    %249 = vmatprep.subr.mxu0 0.0
    %250 = vmatpush1.msra.mxu0 0.0
    %251 = vmatprep.subr.mxu0 0.0
    %252 = vmatpush1.msra.mxu0 0.0
    %253 = vmatprep.subr.mxu0 0.0
    %254 = vmatpush1.msra.mxu0 0.0
    %255 = vmatprep.subr.mxu0 0.0
    %256 = vmatpush1.msra.mxu0 0.0
    %257 = vmatprep.subr.mxu0 0.0
    %258 = vmatpush1.msra.mxu0 0.0
    %259 = vmatprep.subr.mxu0 0.0
    %260 = vmatpush1.msra.mxu0 0.0
    %261 = vmatprep.subr.mxu0 0.0
    %262 = vmatpush1.msra.mxu0 0.0
    %263 = vmatprep.subr.mxu0 0.0
    %264 = vmatpush1.msra.mxu0 0.0
    %265 = vmatprep.subr.mxu0 0.0
    %266 = vmatpush1.msra.mxu0 0.0
    %267 = vmatprep.subr.mxu0 0.0
    %268 = vmatpush1.msra.mxu0 0.0
    %269 = vmatprep.subr.mxu0 0.0
    %270 = vmatpush1.msra.mxu0 0.0
    %271 = vmatprep.subr.mxu0 0.0
    %272 = vmatpush1.msra.mxu0 0.0
    %273 = vmatprep.subr.mxu0 0.0
    %274 = vmatpush1.msra.mxu0 0.0
    %275 = vmatprep.subr.mxu0 0.0
    %276 = vmatpush1.msra.mxu0 0.0
    %277 = vmatprep.subr.mxu0 0.0
    %278 = vmatpush1.msra.mxu0 0.0
    %279 = vmatprep.mubr.f32.mxu0 0.0
    %280 = vmatmul.mubr.f32.gmra.mrb[0].mxu0 %v213
    %v281 = vpop.f32.mrb[0].mxu0
    %v282 = vadd.f32 %v199, %v281
    %v283 = vpop.f32.mrb[0].mxu0
    %v284 = vadd.f32 %v203, %v283
    %285 = vdwg.mxu0
    %286 = vmatprep.subr.mxu0 0.0
    %287 = vmatpush1.msra.mxu0 %v184
    %288 = vmatprep.subr.mxu0 0.0
    %289 = vmatpush1.msra.mxu0 %v187
    %290 = vmatprep.subr.mxu0 0.0
    %291 = vmatpush1.msra.mxu0 %v190
    %292 = vmatprep.subr.mxu0 0.0
    %293 = vmatpush1.msra.mxu0 %v193
    %294 = vmatprep.subr.mxu0 0.0
    %295 = vmatpush1.msra.mxu0 0.0
    %296 = vmatprep.subr.mxu0 0.0
    %297 = vmatpush1.msra.mxu0 0.0
    %298 = vmatprep.subr.mxu0 0.0
    %299 = vmatpush1.msra.mxu0 0.0
    %300 = vmatprep.subr.mxu0 0.0
    %301 = vmatpush1.msra.mxu0 0.0
    %302 = vmatprep.subr.mxu0 0.0
    %303 = vmatpush1.msra.mxu0 0.0
    %304 = vmatprep.subr.mxu0 0.0
    %305 = vmatpush1.msra.mxu0 0.0
    %306 = vmatprep.subr.mxu0 0.0
    %307 = vmatpush1.msra.mxu0 0.0
    %308 = vmatprep.subr.mxu0 0.0
    %309 = vmatpush1.msra.mxu0 0.0
    %310 = vmatprep.subr.mxu0 0.0
    %311 = vmatpush1.msra.mxu0 0.0
    %312 = vmatprep.subr.mxu0 0.0
    %313 = vmatpush1.msra.mxu0 0.0
    %314 = vmatprep.subr.mxu0 0.0
    %315 = vmatpush1.msra.mxu0 0.0
    %316 = vmatprep.subr.mxu0 0.0
    %317 = vmatpush1.msra.mxu0 0.0
    %318 = vmatprep.subr.mxu0 0.0
    %319 = vmatpush1.msra.mxu0 0.0
    %320 = vmatprep.subr.mxu0 0.0
    %321 = vmatpush1.msra.mxu0 0.0
    %322 = vmatprep.subr.mxu0 0.0
    %323 = vmatpush1.msra.mxu0 0.0
    %324 = vmatprep.subr.mxu0 0.0
    %325 = vmatpush1.msra.mxu0 0.0
    %326 = vmatprep.subr.mxu0 0.0
    %327 = vmatpush1.msra.mxu0 0.0
    %328 = vmatprep.subr.mxu0 0.0
    %329 = vmatpush1.msra.mxu0 0.0
    %330 = vmatprep.subr.mxu0 0.0
    %331 = vmatpush1.msra.mxu0 0.0
    %332 = vmatprep.subr.mxu0 0.0
    %333 = vmatpush1.msra.mxu0 0.0
    %334 = vmatprep.subr.mxu0 0.0
    %335 = vmatpush1.msra.mxu0 0.0
    %336 = vmatprep.subr.mxu0 0.0
    %337 = vmatpush1.msra.mxu0 0.0
    %338 = vmatprep.subr.mxu0 0.0
    %339 = vmatpush1.msra.mxu0 0.0
    %340 = vmatprep.subr.mxu0 0.0
    %341 = vmatpush1.msra.mxu0 0.0
    %342 = vmatprep.subr.mxu0 0.0
    %343 = vmatpush1.msra.mxu0 0.0
    %344 = vmatprep.subr.mxu0 0.0
    %345 = vmatpush1.msra.mxu0 0.0
    %346 = vmatprep.subr.mxu0 0.0
    %347 = vmatpush1.msra.mxu0 0.0
    %348 = vmatprep.subr.mxu0 0.0
    %349 = vmatpush1.msra.mxu0 0.0
    %350 = vmatprep.mubr.f32.mxu0 0.0
    %351 = vmatmul.mubr.f32.gmra.mrb[0].mxu0 %v213
    %v352 = vpop.f32.mrb[0].mxu0
    %v353 = vadd.f32 %v207, %v352
    %v354 = vpop.f32.mrb[0].mxu0
    %355 = vdwg.mxu0
    %v356 = vmax.f32 %v284, 0.0
    %vm357 = vcmp.ne.f32.partialorder %v284, %v284
    %v358 = vadd.f32 %v284, 0.0
    %v359 = vand.u32 2147483647, %v284
    %v360 = vsub.f32 0.0, %v359
    %v361 = vmul.f32 %v360, 1.442695
    %v362 = vpow.pop %v361
    %v363 = vadd.f32 %v362, 1.0
    %v364 = vlog2.pop %v363
    %v365 = vmul.f32 %v364, 0.6931472
    %v366 = vmul.f32 -0.5, %v362
    %v367 = vadd.f32 %v366, 1.0
    %v368 = vmul.f32 %v367, %v362
    %v369 = vand.u32 2147483647, %v362
    %vm370 = vcmp.lt.f32.partialorder %v369, 0.0004427343
    %v371 = vsel %vm370, %v368, %v365
    %v372 = vadd.f32 %v356, %v371
    %v373 = vsel %vm357, %v358, %v372
    %v374 = vmax.f32 %v353, -3.0
    %v375 = vmin.f32 %v374, 3.0
    %v376 = vxor.u32 %v375, 2147483648
    %v377 = vmul.f32 %v376, 1.442695
    %v378 = vpow.pop %v377
    %v379 = vadd.f32 %v378, 1.0
    %v380 = vrcp.pop %v379
    %v381 = vmul.f32 1.0, %v380
    %382 = vst [vmem:[#allocation11] sm:$0xff] %v282
    %383 = vst [vmem:[#allocation11 + $0x8] sm:$0xff] %v373
    %384 = vst [vmem:[#allocation11 + $0x10] sm:$0xff] %v381
    // Predicated region
    $region42: #{tpu_custom_call.1} parent=1 // pred_check
      _
    $region43: #{tpu_custom_call.1} parent=1 // pred_check_branch
      %386 = sbr.rel (0) target = $region45
    $region44: #{tpu_custom_call.1} parent=1 // pred_region
      %s388 = ssub.s32 384, 384
      %389 = vsyncadd [#allocation4], %s388
      %s391 = sshll.u32 [#allocation11], 4
      %s392 = int_to_ptr.vmem [resolvable:$true] %s391
      %394 = dma.vmem_to_hbm [thread:$0]  %s392, 384, %s5, [#allocation4]
    $region45: #{tpu_custom_call.1} parent=1 // pred_fallthru
      _
    // Predicated region
    $region46: #{tpu_custom_call.1} parent=1 // pred_check
      _
    $region47: #{tpu_custom_call.1} parent=1 // pred_check_branch
      %396 = sbr.rel (0) target = $region49
    $region48: #{tpu_custom_call.1} parent=1 // pred_region
      %397 = dma.done [#allocation4], 384
    $region49: #{tpu_custom_call.1} parent=1 // pred_fallthru
      _
    %398 = vsyncpa [#allocation3], 1
    %399 = vsyncpa [#allocation6], 1
    %400 = vsyncpa [#allocation9], 1
    %401 = vsyncpa [#allocation4], 1

</llo_original>
